<compile_context>
chip_gen: v7x
topology: tpu7x:2x2x1
jax: 0.10.0
libtpu: 0.0.40
codegen_flags: <defaults>
</compile_context>

<pallas_src>
import numpy as np
import jax
import jax.numpy as jnp
from jax.experimental import pallas as pl
from jax.experimental.pallas import tpu as pltpu


def _make_pixel_shuffle_kernel(r, H, W, CB):
    r2 = r * r
    L = H * r2

    def kernel(x_ref, o_ref, y_ref):
        # x_ref: (CB*r2, H, W)  CB channel groups; channel (a*r + b) within a group
        # y_ref: (L, W)         scratch; row j = h*r2 + b*r + a
        # o_ref: (CB, W, L)     output slabs; lane j = h*r2 + b*r + a
        for g in range(CB):
            for a in range(r):
                for b in range(r):
                    plane = x_ref[g * r2 + a * r + b]          # (H, W) contiguous load
                    # sublane-strided scatter: rows h*r2 + (b*r + a), h = 0..H-1
                    y_ref[pl.ds(b * r + a, H, stride=r2), :] = plane
            # H <-> W swap on the XLU; store is a lane-dense contiguous (W, L) block.
            o_ref[g] = jnp.transpose(y_ref[...])

    return kernel


def customized_pixel_shuffle(x, upscale_factor):
    """Pallas TPU equivalent of CustomizedPixelShuffle.forward for 4-D NCHW input."""
    r = int(upscale_factor)
    N, C, H, W = x.shape
    r2 = r * r
    assert C % r2 == 0, "channels must be divisible by upscale_factor**2"
    Cp = C // r2
    L = H * r2

    # Coarsen the grid: pack several channel groups per step, targeting ~2 MiB of
    # input per step (amortizes the ~0.35us/step pipeline overhead while leaving
    # ample headroom even in v7x's 64 MiB VMEM with double-buffered in/out blocks).
    slab_bytes = r2 * H * W * x.dtype.itemsize
    CB = 1
    for d in range(1, Cp + 1):
        if Cp % d == 0 and d * slab_bytes <= (2 << 20):
            CB = d
    # TODO(synk): a single channel group larger than VMEM (huge H*W*r^2) would
    # additionally need W-tiling; not required for the shapes exercised here.

    kernel = _make_pixel_shuffle_kernel(r, H, W, CB)

    out_buf = pl.pallas_call(
        kernel,
        out_shape=jax.ShapeDtypeStruct((N, Cp, W, L), x.dtype),
        grid_spec=pltpu.PrefetchScalarGridSpec(
            num_scalar_prefetch=0,
            grid=(N, Cp // CB),
            in_specs=[
                pl.BlockSpec((None, CB * r2, H, W), lambda i, j: (i, j, 0, 0)),
            ],
            out_specs=pl.BlockSpec((None, CB, W, L), lambda i, j: (i, j, 0, 0)),
            scratch_shapes=[pltpu.VMEM((L, W), x.dtype)],
        ),
        compiler_params=pltpu.CompilerParams(
            dimension_semantics=("parallel", "parallel"),
            vmem_limit_bytes=32 * 1024 * 1024,
        ),
    )(x)

    # (N, Cp, W, H*r^2) already has the shuffle memory order (w, h, b, a); the
    # final view to (H*r, W*r) preserves the linear element order.
    return out_buf.reshape(N, Cp, H * r, W * r)


def _reference(x, r):
    """Pure-JAX mirror of the PyTorch module (for verification)."""
    N, C, H, W = x.shape
    Cp = C // (r * r)
    iv = x.reshape(N, Cp, r, r, H, W)
    p = jnp.transpose(iv, (0, 1, 5, 4, 3, 2))
    return p.reshape(N, Cp, H * r, W * r)


if __name__ == "__main__":
    key = jax.random.PRNGKey(0)
    upscale = 2
    x = jax.random.normal(key, (2, 4, 16, 16), dtype=jnp.float32)  # N=2, C=4, H=W=16

    out = customized_pixel_shuffle(x, upscale)
    out = jax.block_until_ready(out)

    ref = _reference(x, upscale)
    assert out.shape == (2, 1, 32, 32), out.shape
    # Pure permutation -> must be bit-exact (no arithmetic anywhere in the kernel).
    np.testing.assert_array_equal(np.asarray(out), np.asarray(ref))

    print("KERNEL_OK")
</pallas_src>

<mosaic_0001>
module attributes {stable_mosaic.version = 11 : i64} {
  func.func @kernel(%arg0: i32, %arg1: i32, %arg2: memref<1x4x16x16xf32, #tpu.memory_space<vmem>>, %arg3: memref<1x1x16x64xf32, #tpu.memory_space<vmem>>, %arg4: memref<64x16xf32, #tpu.memory_space<vmem>>) attributes {dimension_semantics = [#tpu.dimension_semantics<parallel>, #tpu.dimension_semantics<parallel>], iteration_bounds = array<i64: 2, 1>, scalar_prefetch = 0 : i64, scratch_operands = 1 : i64, tpu.core_type = #tpu.core_type<tc>, window_params = [{transform_indices = @transform_0, window_bounds = array<i64: 1, 4, 16, 16>}, {transform_indices = @transform_1, window_bounds = array<i64: 1, 1, 16, 64>}]} {
    %c0 = arith.constant 0 : index
    %c0_0 = arith.constant 0 : index
    %c0_1 = arith.constant 0 : index
    %c0_2 = arith.constant 0 : index
    %0 = vector.load %arg2[%c0, %c0_0, %c0_1, %c0_2] : memref<1x4x16x16xf32, #tpu.memory_space<vmem>>, vector<1x1x16x16xf32>
    %1 = vector.shape_cast %0 : vector<1x1x16x16xf32> to vector<16x16xf32>
    %c0_3 = arith.constant 0 : index
    %c0_4 = arith.constant 0 : index
    %2 = tpu.strided_load %arg4[%c0_3, %c0_4] {strides = array<i32: 4, 1>} : memref<64x16xf32, #tpu.memory_space<vmem>>, vector<16x16xf32>
    tpu.strided_store %arg4[%c0_3, %c0_4], %1 {strides = array<i32: 4, 1>} : memref<64x16xf32, #tpu.memory_space<vmem>>, vector<16x16xf32>
    %c0_5 = arith.constant 0 : index
    %c1 = arith.constant 1 : index
    %c0_6 = arith.constant 0 : index
    %c0_7 = arith.constant 0 : index
    %3 = vector.load %arg2[%c0_5, %c1, %c0_6, %c0_7] : memref<1x4x16x16xf32, #tpu.memory_space<vmem>>, vector<1x1x16x16xf32>
    %4 = vector.shape_cast %3 : vector<1x1x16x16xf32> to vector<16x16xf32>
    %c2 = arith.constant 2 : index
    %c0_8 = arith.constant 0 : index
    %5 = tpu.strided_load %arg4[%c2, %c0_8] {strides = array<i32: 4, 1>} : memref<64x16xf32, #tpu.memory_space<vmem>>, vector<16x16xf32>
    tpu.strided_store %arg4[%c2, %c0_8], %4 {strides = array<i32: 4, 1>} : memref<64x16xf32, #tpu.memory_space<vmem>>, vector<16x16xf32>
    %c0_9 = arith.constant 0 : index
    %c2_10 = arith.constant 2 : index
    %c0_11 = arith.constant 0 : index
    %c0_12 = arith.constant 0 : index
    %6 = vector.load %arg2[%c0_9, %c2_10, %c0_11, %c0_12] : memref<1x4x16x16xf32, #tpu.memory_space<vmem>>, vector<1x1x16x16xf32>
    %7 = vector.shape_cast %6 : vector<1x1x16x16xf32> to vector<16x16xf32>
    %c1_13 = arith.constant 1 : index
    %c0_14 = arith.constant 0 : index
    %8 = tpu.strided_load %arg4[%c1_13, %c0_14] {strides = array<i32: 4, 1>} : memref<64x16xf32, #tpu.memory_space<vmem>>, vector<16x16xf32>
    tpu.strided_store %arg4[%c1_13, %c0_14], %7 {strides = array<i32: 4, 1>} : memref<64x16xf32, #tpu.memory_space<vmem>>, vector<16x16xf32>
    %c0_15 = arith.constant 0 : index
    %c3 = arith.constant 3 : index
    %c0_16 = arith.constant 0 : index
    %c0_17 = arith.constant 0 : index
    %9 = vector.load %arg2[%c0_15, %c3, %c0_16, %c0_17] : memref<1x4x16x16xf32, #tpu.memory_space<vmem>>, vector<1x1x16x16xf32>
    %10 = vector.shape_cast %9 : vector<1x1x16x16xf32> to vector<16x16xf32>
    %c3_18 = arith.constant 3 : index
    %c0_19 = arith.constant 0 : index
    %11 = tpu.strided_load %arg4[%c3_18, %c0_19] {strides = array<i32: 4, 1>} : memref<64x16xf32, #tpu.memory_space<vmem>>, vector<16x16xf32>
    tpu.strided_store %arg4[%c3_18, %c0_19], %10 {strides = array<i32: 4, 1>} : memref<64x16xf32, #tpu.memory_space<vmem>>, vector<16x16xf32>
    %c0_20 = arith.constant 0 : index
    %c0_21 = arith.constant 0 : index
    %12 = vector.load %arg4[%c0_20, %c0_21] : memref<64x16xf32, #tpu.memory_space<vmem>>, vector<64x16xf32>
    %13 = tpu.transpose %12, [1, 0] : vector<64x16xf32> -> vector<16x64xf32>
    %c0_22 = arith.constant 0 : index
    %c0_23 = arith.constant 0 : index
    %c0_24 = arith.constant 0 : index
    %c0_25 = arith.constant 0 : index
    %14 = vector.load %arg3[%c0_22, %c0_23, %c0_24, %c0_25] : memref<1x1x16x64xf32, #tpu.memory_space<vmem>>, vector<1x1x16x64xf32>
    %15 = vector.shape_cast %14 : vector<1x1x16x64xf32> to vector<16x64xf32>
    %16 = vector.shape_cast %13 : vector<16x64xf32> to vector<1x1x16x64xf32>
    tpu.vector_store %arg3[%c0_22, %c0_23, %c0_24, %c0_25], %16 {strides = array<i32>} : memref<1x1x16x64xf32, #tpu.memory_space<vmem>>, vector<1x1x16x64xf32>,
    return
  }
  func.func @transform_0(%arg0: i32, %arg1: i32) -> (i32, i32, i32, i32) {
    %c0_i32 = arith.constant 0 : i32
    %c0_i32_0 = arith.constant 0 : i32
    %c0_i32_1 = arith.constant 0 : i32
    return %arg0, %arg1, %c0_i32, %c0_i32_0 : i32, i32, i32, i32
  }
  func.func @transform_1(%arg0: i32, %arg1: i32) -> (i32, i32, i32, i32) {
    %c0_i32 = arith.constant 0 : i32
    %c0_i32_0 = arith.constant 0 : i32
    %c0_i32_1 = arith.constant 0 : i32
    return %arg0, %arg1, %c0_i32, %c0_i32_0 : i32, i32, i32, i32
  }
}

</mosaic_0001>

<llo_original>
// kernel: tpu_custom_call.1
$region0: #{tpu_custom_call.1}
  #allocation0 [shape = 'u32[]', space=smem, size = 0x4, offset = 0x4, fixed_abs, tag = 'smem constant byte address 0x4 - core index']
  #allocation1 [shape = 'u32[144,128]{1,0:T(1,128)}', space=vmem, size = 0x12000, scoped, tag = 'internal scratch']
  #allocation2 [shape = 'f32[64,16]{1,0:T(8,128)}', space=vmem, size = 0x8000, scoped, tag = 'scratch operand']
  %s0 = inlined_call_operand.hbm [shape: f32[2,4,16,16], index: 0, kind: input, shape index: {}]
  %s1 = inlined_call_operand.hbm [shape: f32[2,1,16,64], index: 1, kind: output, shape index: {}]
  %s2 = sld [smem:[#allocation0]]
  $region41: #{tpu_custom_call.1} parent=0
    _
  %s4 = ssub.s32 1, %s2
  %s5 = scalar_select 0, %s4, %s2
  $region1: #{tpu_custom_call.1} parent=0
    #allocation3 [shape = 'u8[65536]{0}', space=vmem, size = 0x10000, scoped, tag = 'input window, operand 0']
    #allocation4 [shape = 's32[2]{0}', space=sflag, size = 0x8, scoped, tag = 'scoped memory for tpu_custom_call.1']
    #allocation5 [shape = 's32[2]{0}', space=sflag, size = 0x8, scoped, tag = 'scoped memory for tpu_custom_call.1']
    #allocation6 [shape = 'u8[16384]{0}', space=vmem, size = 0x4000, scoped, tag = 'output window, operand 0']
    %6 = vsyncpa [#allocation4], 0
    %s7 = scalar_lea.sflag [#allocation4], 1
    %8 = vsyncpa %s7, 0
    %9 = vsyncpa [#allocation5], 0
    %s10 = scalar_lea.sflag [#allocation5], 1
    %11 = vsyncpa %s10, 0
    loop: start=0, step=1, limit=4
    $region2: #{tpu_custom_call.1} parent=1 // loop_pre_header
      _
    $region3: #{tpu_custom_call.1} parent=1 // loop_header
      %s13 = sphi 0, %s17
      %p14 = scmp.ge.s32.totalorder %s13, 4
      %s20 = sphi 0, %s32
      %s21 = sphi 0, %s28
      %s22 = sphi 0, %s20
      %s23 = sphi 0, %s21
      %s24 = sphi 0, %s22
      %s25 = sphi 0, %s23
      %s37 = sphi 0, %s39
      %s40 = sphi 0, %s37
      %s41 = sphi 0, %s40
      %s57 = sphi 0, %s41
      %s65 = sphi 0, %s67
      %s68 = sphi 0, %s65
      %s69 = sphi 0, %s68
      %s85 = sphi 0, %s69
    $region4: #{tpu_custom_call.1} parent=1 // loop_header_branch
      %16 = sbr.rel (%p14) target = $region8
    $region5: #{tpu_custom_call.1} parent=1 // loop_body
      %s18 = ssub.s32 %s13, 1
      %s19 = ssub.s32 %s13, 2
      %s26 = sadd.s32 1, %s21
      %p27 = scmp.ge.s32.totalorder %s26, 1
      %s28 = scalar_select %p27, 0, %s26
      %s29 = sadd.s32 1, %s20
      %s30 = scalar_select %p27, %s29, %s20
      %p31 = scmp.ge.s32.totalorder %s30, 2
      %s32 = scalar_select %p31, 0, %s30
      %s33 = ssub.s32 %s20, %s32
      %s34 = ssub.s32 %s21, %s28
      %s35 = sor.u32 %s33, %s34
      %p36 = scmp.eq.s32.totalorder %s35, 0
      %s38 = sadd.s32 %s37, 1
      %s39 = scalar_select %p36, %s37, %s38
      %p42 = pneg %p36
      %p43 = scmp.eq.s32.totalorder %s13, 1
      %p44 = por %p42, %p43
      %p45 = scmp.ne.s32.totalorder %s37, %s40
      %p46 = scmp.eq.s32.totalorder %s13, 0
      %p47 = por %p45, %p46
      %p48 = scmp.ne.s32.totalorder %s37, %s40
      %p49 = scmp.eq.s32.totalorder %s18, 1
      %p50 = por %p48, %p49
      %p51 = scmp.ne.s32.totalorder %s40, %s41
      %p52 = scmp.eq.s32.totalorder %s18, 0
      %p53 = por %p51, %p52
      %p54 = scmp.ne.s32.totalorder %s40, %s41
      %p55 = scmp.eq.s32.totalorder %s19, 1
      %p56 = por %p54, %p55
      %p58 = scmp.ne.s32.totalorder %s41, %s57
      %p59 = scmp.eq.s32.totalorder %s19, 0
      %p60 = por %p58, %p59
      %s61 = ssub.s32 %s20, %s32
      %s62 = ssub.s32 %s21, %s28
      %s63 = sor.u32 %s61, %s62
      %p64 = scmp.eq.s32.totalorder %s63, 0
      %s66 = sadd.s32 %s65, 1
      %s67 = scalar_select %p64, %s65, %s66
      %p70 = pneg %p64
      %p71 = scmp.eq.s32.totalorder %s13, 1
      %p72 = por %p70, %p71
      %p73 = scmp.ne.s32.totalorder %s65, %s68
      %p74 = scmp.eq.s32.totalorder %s13, 0
      %p75 = por %p73, %p74
      %p76 = scmp.ne.s32.totalorder %s65, %s68
      %p77 = scmp.eq.s32.totalorder %s18, 1
      %p78 = por %p76, %p77
      %p79 = scmp.ne.s32.totalorder %s68, %s69
      %p80 = scmp.eq.s32.totalorder %s18, 0
      %p81 = por %p79, %p80
      %p82 = scmp.ne.s32.totalorder %s68, %s69
      %p83 = scmp.eq.s32.totalorder %s19, 1
      %p84 = por %p82, %p83
      %p86 = scmp.ne.s32.totalorder %s69, %s85
      %p87 = scmp.eq.s32.totalorder %s19, 0
      %p88 = por %p86, %p87
      %p89 = scmp.le.s32.totalorder 1, %s13
      %p90 = scmp.lt.s32.totalorder %s13, 3
      %p91 = pnand %p89, %p90
      %p92 = pneg %p91
      // Predicated region
      $region9: #{tpu_custom_call.1} parent=5 // pred_check
        _
      $region10: #{tpu_custom_call.1} parent=5 // pred_check_branch
        %94 = sbr.rel (%p91) target = $region12
      $region11: #{tpu_custom_call.1} parent=5 // pred_region
        %s95 = ssub.s32 %s13, 1
      $region12: #{tpu_custom_call.1} parent=5 // pred_fallthru
        _
      %p96 = scmp.lt.s32.totalorder %s13, 2
      // Predicated region
      $region13: #{tpu_custom_call.1} parent=5 // pred_check
        %p97 = pneg %p96
      $region14: #{tpu_custom_call.1} parent=5 // pred_check_branch
        %99 = sbr.rel (%p97) target = $region16
      $region15: #{tpu_custom_call.1} parent=5 // pred_region
        // Predicated region
        $region17: #{tpu_custom_call.1} parent=15 // pred_check
          %p100 = pneg %p47
        $region18: #{tpu_custom_call.1} parent=15 // pred_check_branch
          %102 = sbr.rel (%p100) target = $region20
        $region19: #{tpu_custom_call.1} parent=15 // pred_region
          %s103 = sand.u32 %s37, 1
          %s104 = scalar_lea.sflag [#allocation4], %s103
          %s105 = sand.u32 %s37, 1
          %s106 = smul.addr %s105, 64
          %s107 = scalar_lea.vmem [#allocation3], %s106
          %s108 = smul.u32 4, %s21
          %s110 = ssub.s32 1024, 1024
          %111 = vsyncadd %s104, %s110
          %s112 = smul.addr %s108, 2
          %s113 = smul.addr %s20, 8
          %s114 = sadd.s32 %s112, %s113
          %s115 = smul.addr %s114, 128
          %s116 = scalar_lea.hbm %s0, %s115
          %s117 = sshll.u32 %s107, 4
          %s118 = int_to_ptr.vmem [resolvable:$true] %s117
          %123 = dma.hbm_to_vmem [thread:$0]  %s116, 1024, %s118, %s104, 128, 128, 8
        $region20: #{tpu_custom_call.1} parent=15 // pred_fallthru
          _
      $region16: #{tpu_custom_call.1} parent=5 // pred_fallthru
        _
      %p124 = scmp.le.s32.totalorder 1, %s13
      %p125 = scmp.lt.s32.totalorder %s13, 3
      %p126 = pnand %p124, %p125
      %p127 = pneg %p126
      // Predicated region
      $region21: #{tpu_custom_call.1} parent=5 // pred_check
        _
      $region22: #{tpu_custom_call.1} parent=5 // pred_check_branch
        %129 = sbr.rel (%p126) target = $region24
      $region23: #{tpu_custom_call.1} parent=5 // pred_region
        %s130 = ssub.s32 %s13, 1
        %s131 = sand.u32 %s40, 1
        %s132 = scalar_lea.sflag [#allocation4], %s131
        %s133 = sand.u32 %s40, 1
        %s134 = smul.addr %s133, 64
        %s135 = scalar_lea.vmem [#allocation3], %s134
        // Predicated region
        $region25: #{tpu_custom_call.1} parent=23 // pred_check
          %p136 = pneg %p53
        $region26: #{tpu_custom_call.1} parent=23 // pred_check_branch
          %138 = sbr.rel (%p136) target = $region28
        $region27: #{tpu_custom_call.1} parent=23 // pred_region
          %139 = dma.done %s132, 1024
        $region28: #{tpu_custom_call.1} parent=23 // pred_fallthru
          _
        %s140 = sand.u32 %s40, 1
        %s141 = scalar_lea.sflag [#allocation4], %s140
        %s142 = sand.u32 %s40, 1
        %s143 = smul.addr %s142, 64
        %s144 = scalar_lea.vmem [#allocation3], %s143
        %p145 = pneg %p53
        %p146 = pneg %p50
        %p147 = pneg %p81
        %p148 = pneg %p78
        %s149 = sand.u32 %s68, 1
        %s150 = scalar_lea.sflag [#allocation5], %s149
        %s151 = sand.u32 %s68, 1
        %s152 = smul.addr %s151, 16
        %s153 = scalar_lea.vmem [#allocation6], %s152
        %s154 = smul.u32 4, %s23
        %v155 = vld [vmem:[%s135] sm:$0xff]
        %v156 = vld [vmem:[%s135 + $0x8] sm:$0xff]
        %157 = vst [vmem:[#allocation2] ss:$4 sm:$0xff] %v155
        %s158 = scalar_lea.vmem [#allocation2], 32
        %159 = vst [vmem:[%s158] ss:$4 sm:$0xff] %v156
        %s160 = scalar_lea.vmem %s135, 16 [#allocation3]
        %v161 = vld [vmem:[%s160] sm:$0xff]
        %v162 = vld [vmem:[%s160 + $0x8] sm:$0xff]
        %s163 = scalar_lea.vmem [#allocation2], 2
        %164 = vst [vmem:[%s163] ss:$4 sm:$0xff] %v161
        %s165 = scalar_lea.vmem [#allocation2], 34
        %166 = vst [vmem:[%s165] ss:$4 sm:$0xff] %v162
        %s167 = scalar_lea.vmem %s135, 32 [#allocation3]
        %v168 = vld [vmem:[%s167] sm:$0xff]
        %v169 = vld [vmem:[%s167 + $0x8] sm:$0xff]
        %s170 = scalar_lea.vmem [#allocation2], 1
        %171 = vst [vmem:[%s170] ss:$4 sm:$0xff] %v168
        %s172 = scalar_lea.vmem [#allocation2], 33
        %173 = vst [vmem:[%s172] ss:$4 sm:$0xff] %v169
        %s174 = scalar_lea.vmem %s135, 48 [#allocation3]
        %v175 = vld [vmem:[%s174] sm:$0xff]
        %v176 = vld [vmem:[%s174 + $0x8] sm:$0xff]
        %s177 = scalar_lea.vmem [#allocation2], 3
        %178 = vst [vmem:[%s177] ss:$4 sm:$0xff] %v175
        %s179 = scalar_lea.vmem [#allocation2], 35
        %180 = vst [vmem:[%s179] ss:$4 sm:$0xff] %v176
        %v181 = vld [vmem:[#allocation2] sm:$0xff]
        %v182 = vld [vmem:[#allocation2 + $0x8] sm:$0xff]
        %v183 = vld [vmem:[#allocation2 + $0x10] sm:$0xff]
        %v184 = vld [vmem:[#allocation2 + $0x18] sm:$0xff]
        %v185 = vld [vmem:[#allocation2 + $0x20] sm:$0xff]
        %v186 = vld [vmem:[#allocation2 + $0x28] sm:$0xff]
        %v187 = vld [vmem:[#allocation2 + $0x30] sm:$0xff]
        %v188 = vld [vmem:[#allocation2 + $0x38] sm:$0xff]
        %189 = vxpose.xlu0.b32.start [1/16] %v181, 128
        %190 = vxpose.xlu0.b32.cont [2/16] %v182, 128
        %191 = vxpose.xlu0.b32.cont [3/16] %v183, 128
        %192 = vxpose.xlu0.b32.cont [4/16] %v184, 128
        %193 = vxpose.xlu0.b32.cont [5/16] %v185, 128
        %194 = vxpose.xlu0.b32.cont [6/16] %v186, 128
        %195 = vxpose.xlu0.b32.cont [7/16] %v187, 128
        %196 = vxpose.xlu0.b32.cont [8/16] %v188, 128
        %197 = vxpose.xlu0.b32.cont [9/16] 0.0, 128
        %198 = vxpose.xlu0.b32.cont [10/16] 0.0, 128
        %199 = vxpose.xlu0.b32.cont [11/16] 0.0, 128
        %200 = vxpose.xlu0.b32.cont [12/16] 0.0, 128
        %201 = vxpose.xlu0.b32.cont [13/16] 0.0, 128
        %202 = vxpose.xlu0.b32.cont [14/16] 0.0, 128
        %203 = vxpose.xlu0.b32.cont [15/16] 0.0, 128
        %204 = vxpose.xlu0.b32.end [16/16] 0.0, 128
        %v205 = vpop.trf.xlu0
        %v206 = vpop.trf.xlu0
        %v207 = vpop.trf.xlu0
        %v208 = vpop.trf.xlu0
        %v209 = vpop.trf.xlu0
        %v210 = vpop.trf.xlu0
        %v211 = vpop.trf.xlu0
        %v212 = vpop.trf.xlu0
        %v213 = vpop.trf.xlu0
        %v214 = vpop.trf.xlu0
        %v215 = vpop.trf.xlu0
        %v216 = vpop.trf.xlu0
        %v217 = vpop.trf.xlu0
        %v218 = vpop.trf.xlu0
        %v219 = vpop.trf.xlu0
        %v220 = vpop.trf.xlu0
        %vm221 = vcmask 523264
        %222 = vst.msk [vmem:[%s153] sm:$0xff] %vm221, %v205
        %223 = vst.msk [vmem:[%s153 + $0x8] sm:$0xff] %vm221, %v206
        %s224 = sand.u32 %s68, 1
        %s225 = scalar_lea.sflag [#allocation5], %s224
        %s226 = sand.u32 %s68, 1
        %s227 = smul.addr %s226, 16
        %s228 = scalar_lea.vmem [#allocation6], %s227
        // Predicated region
        $region29: #{tpu_custom_call.1} parent=23 // pred_check
          %p229 = pneg %p78
        $region30: #{tpu_custom_call.1} parent=23 // pred_check_branch
          %231 = sbr.rel (%p229) target = $region32
        $region31: #{tpu_custom_call.1} parent=23 // pred_region
          %s233 = ssub.s32 256, 256
          %234 = vsyncadd %s225, %s233
          %s235 = smul.addr %s23, 2
          %s236 = smul.addr %s22, 2
          %s237 = sadd.s32 %s235, %s236
          %s238 = smul.addr %s237, 128
          %s239 = scalar_lea.hbm %s1, %s238
          %s240 = sshll.u32 %s228, 4
          %s241 = int_to_ptr.vmem [resolvable:$true] %s240
          %246 = dma.vmem_to_hbm [thread:$0]  %s241, 256, %s239, %s225, 128, 128, 8
        $region32: #{tpu_custom_call.1} parent=23 // pred_fallthru
          _
      $region24: #{tpu_custom_call.1} parent=5 // pred_fallthru
        _
      %p247 = scmp.le.s32.totalorder 2, %s13
      // Predicated region
      $region33: #{tpu_custom_call.1} parent=5 // pred_check
        %p248 = pneg %p247
      $region34: #{tpu_custom_call.1} parent=5 // pred_check_branch
        %250 = sbr.rel (%p248) target = $region36
      $region35: #{tpu_custom_call.1} parent=5 // pred_region
        %s251 = ssub.s32 %s13, 2
        // Predicated region
        $region37: #{tpu_custom_call.1} parent=35 // pred_check
          %p252 = pneg %p84
        $region38: #{tpu_custom_call.1} parent=35 // pred_check_branch
          %254 = sbr.rel (%p252) target = $region40
        $region39: #{tpu_custom_call.1} parent=35 // pred_region
          %s255 = sand.u32 %s69, 1
          %s256 = scalar_lea.sflag [#allocation5], %s255
          %s257 = sand.u32 %s69, 1
          %s258 = smul.addr %s257, 16
          %s259 = scalar_lea.vmem [#allocation6], %s258
          %260 = dma.done %s256, 256
        $region40: #{tpu_custom_call.1} parent=35 // pred_fallthru
          _
      $region36: #{tpu_custom_call.1} parent=5 // pred_fallthru
        _
    $region6: #{tpu_custom_call.1} parent=1 // loop_footer
      %s17 = sadd.s32 1, %s13
    $region7: #{tpu_custom_call.1} parent=1 // loop_footer_branch
      %12 = sbr.rel target = $region3
    $region8: #{tpu_custom_call.1} parent=1 // loop_exit
      _
    %261 = vsyncpa [#allocation4], 1
    %s262 = scalar_lea.sflag [#allocation4], 1
    %263 = vsyncpa %s262, 1
    %264 = vsyncpa [#allocation5], 1
    %s265 = scalar_lea.sflag [#allocation5], 1
    %266 = vsyncpa %s265, 1

</llo_original>
